<compile_context>
chip_gen: v5e
topology: v5e:2x2
jax: 0.10.0
libtpu: 0.0.40
codegen_flags: <defaults>
</compile_context>

<pallas_src>
import functools

import jax
import jax.numpy as jnp
from jax.experimental import pallas as pl
from jax.experimental.pallas import tpu as pltpu


def rnn_recurrence_kernel(p_ref, w_hh_t_ref, out_ref, h_scratch, *, t_chunk):
    """Sequential part of the RNN: h_t = tanh(P_t + h_{t-1} @ W_hh^T).

    p_ref:      (t_chunk, B, H)  precomputed x_t @ W_ih^T + (b_ih + b_hh)
    w_hh_t_ref: (H, H)           W_hh already transposed (grid-invariant, resident)
    out_ref:    (t_chunk, B, H)  hidden states for this time chunk
    h_scratch:  (B, H)           hidden state carried across grid steps
    """
    # h_0 = 0 at the start of the sequence.
    @pl.when(pl.program_id(0) == 0)
    def _():
        h_scratch[...] = jnp.zeros_like(h_scratch)

    w_hh_t = w_hh_t_ref[...]      # load resident (pre-transposed) weight once
    h = h_scratch[...]            # load carried hidden state once per chunk

    # Fully unrolled inner loop over the static time chunk (equivalent to
    # lax.fori_loop(..., unroll=True)): straight-line code, no per-timestep
    # grid overhead, only the serial h @ W_hh^T matmul remains on the critical
    # path.
    for i in range(t_chunk):
        h = jnp.tanh(
            p_ref[i] + jnp.dot(h, w_hh_t, preferred_element_type=jnp.float32)
        )
        out_ref[i] = h.astype(out_ref.dtype)

    h_scratch[...] = h            # store carried hidden state once per chunk


def rnn_forward(inputs, w_ih, w_hh, b_ih, b_hh, *, t_chunk=8):
    """inputs: (S, B, I) float32; returns (S*B, H) float32 (== out.view(-1, H))."""
    inputs = inputs.astype(jnp.float32)
    S, B, I = inputs.shape
    H = w_ih.shape[0]

    # --- Hoisted, fully parallel input projection (one big MXU-friendly matmul
    #     instead of S tiny serialized ones inside the recurrent kernel).
    proj = (
        jnp.dot(
            inputs.reshape(S * B, I),
            w_ih.astype(jnp.float32).T,
            preferred_element_type=jnp.float32,
        )
        + (b_ih + b_hh).astype(jnp.float32)
    ).reshape(S, B, H)

    # Chunk the time axis; pad S up to a multiple of t_chunk. Padded timesteps
    # (zero projection) come after all real timesteps and are discarded, so the
    # real outputs are unaffected.
    t_chunk = min(t_chunk, max(S, 1))
    n_chunks = pl.cdiv(S, t_chunk)
    s_pad = n_chunks * t_chunk
    if s_pad != S:
        proj = jnp.pad(proj, ((0, s_pad - S), (0, 0), (0, 0)))

    # Pre-transpose W_hh once in the wrapper (no per-step transpose in-kernel).
    w_hh_t = w_hh.astype(jnp.float32).T  # (H, H)

    out = pl.pallas_call(
        functools.partial(rnn_recurrence_kernel, t_chunk=t_chunk),
        out_shape=jax.ShapeDtypeStruct((s_pad, B, H), jnp.float32),
        grid=(n_chunks,),
        in_specs=[
            # Precomputed projection, one time-chunk per grid step.
            # (For very long sequences, add pipeline_mode=pl.Buffered(3) here.)
            pl.BlockSpec((t_chunk, B, H), lambda c: (c, 0, 0)),
            # Resident, pre-transposed recurrent weight.
            pl.BlockSpec((H, H), lambda c: (0, 0)),
        ],
        out_specs=pl.BlockSpec((t_chunk, B, H), lambda c: (c, 0, 0)),
        scratch_shapes=[pltpu.VMEM((B, H), jnp.float32)],  # carried hidden state
        compiler_params=pltpu.CompilerParams(
            dimension_semantics=("arbitrary",),  # recurrence is sequential in time
        ),
    )(proj, w_hh_t)

    return out[:S].reshape(-1, H)


def rnn_forward_ref(inputs, w_ih, w_hh, b_ih, b_hh):
    """Pure-JAX reference for correctness checking."""
    S, B, _ = inputs.shape
    H = w_ih.shape[0]
    h = jnp.zeros((B, H), jnp.float32)
    outs = []
    for t in range(S):
        h = jnp.tanh(inputs[t] @ w_ih.T + b_ih + h @ w_hh.T + b_hh)
        outs.append(h)
    return jnp.stack(outs).reshape(-1, H)


if __name__ == "__main__":
    batch_size = 1
    hidden_size = 4
    input_size = 4
    num_layer = 1  # single layer only (matches the module)

    # Same one-hot input sequence as the module: (5, 1, 4)
    data_x = [1, 0, 2, 2, 3]
    one_hot_lookup = jnp.eye(input_size, dtype=jnp.float32)
    inputs = one_hot_lookup[jnp.array(data_x)].reshape(-1, batch_size, input_size)

    # Deterministic parameter init (nn.RNN-style uniform(-1/sqrt(H), 1/sqrt(H)))
    key = jax.random.PRNGKey(0)
    k1, k2, k3, k4 = jax.random.split(key, 4)
    bound = 1.0 / jnp.sqrt(jnp.float32(hidden_size))
    w_ih = jax.random.uniform(k1, (hidden_size, input_size), jnp.float32, -bound, bound)
    w_hh = jax.random.uniform(k2, (hidden_size, hidden_size), jnp.float32, -bound, bound)
    b_ih = jax.random.uniform(k3, (hidden_size,), jnp.float32, -bound, bound)
    b_hh = jax.random.uniform(k4, (hidden_size,), jnp.float32, -bound, bound)

    out = rnn_forward(inputs, w_ih, w_hh, b_ih, b_hh)
    jax.block_until_ready(out)

    ref = rnn_forward_ref(inputs, w_ih, w_hh, b_ih, b_hh)
    assert out.shape == (len(data_x) * batch_size, hidden_size)
    assert jnp.allclose(out, ref, atol=1e-5, rtol=1e-5)

    print("KERNEL_OK")
</pallas_src>

<mosaic_0001>
module attributes {stable_mosaic.version = 11 : i64} {
  func.func @rnn_recurrence_kernel(%arg0: i32, %arg1: memref<5x1x4xf32, #tpu.memory_space<vmem>>, %arg2: memref<4x4xf32, #tpu.memory_space<vmem>>, %arg3: memref<5x1x4xf32, #tpu.memory_space<vmem>>, %arg4: memref<1x4xf32, #tpu.memory_space<vmem>>) attributes {dimension_semantics = [#tpu.dimension_semantics<arbitrary>], iteration_bounds = array<i64: 1>, scalar_prefetch = 0 : i64, scratch_operands = 1 : i64, tpu.core_type = #tpu.core_type<tc>, window_params = [{transform_indices = @transform_0, window_bounds = array<i64: 5, 1, 4>}, {pipeline_mode = #tpu.pipeline_mode<synchronous>, transform_indices = @transform_1, window_bounds = array<i64: 4, 4>}, {transform_indices = @transform_2, window_bounds = array<i64: 5, 1, 4>}]} {
    %c0_i32 = arith.constant 0 : i32
    %0 = arith.cmpi eq, %arg0, %c0_i32 : i32
    %1 = arith.extui %0 : i1 to i32
    %c0_i32_0 = arith.constant 0 : i32
    %2 = arith.cmpi ne, %1, %c0_i32_0 : i32
    scf.if %2 {
      %cst_36 = arith.constant 0.000000e+00 : f32
      %46 = vector.broadcast %cst_36 : f32 to vector<1x4xf32>
      %c0_37 = arith.constant 0 : index
      %c0_38 = arith.constant 0 : index
      %47 = vector.load %arg4[%c0_37, %c0_38] : memref<1x4xf32, #tpu.memory_space<vmem>>, vector<1x4xf32>
      tpu.vector_store %arg4[%c0_37, %c0_38], %46 {strides = array<i32>} : memref<1x4xf32, #tpu.memory_space<vmem>>, vector<1x4xf32>,
    } else {
    }
    %c0 = arith.constant 0 : index
    %c0_1 = arith.constant 0 : index
    %3 = vector.load %arg2[%c0, %c0_1] : memref<4x4xf32, #tpu.memory_space<vmem>>, vector<4x4xf32>
    %c0_2 = arith.constant 0 : index
    %c0_3 = arith.constant 0 : index
    %4 = vector.load %arg4[%c0_2, %c0_3] : memref<1x4xf32, #tpu.memory_space<vmem>>, vector<1x4xf32>
    %c0_4 = arith.constant 0 : index
    %c0_5 = arith.constant 0 : index
    %c0_6 = arith.constant 0 : index
    %5 = vector.load %arg1[%c0_4, %c0_5, %c0_6] : memref<5x1x4xf32, #tpu.memory_space<vmem>>, vector<1x1x4xf32>
    %6 = vector.shape_cast %5 : vector<1x1x4xf32> to vector<1x4xf32>
    %cst = arith.constant dense<0.000000e+00> : vector<1x4xf32>
    %7 = tpu.matmul %4, %3, %cst {dimension_numbers = #tpu.dot_dimension_numbers<[1], [0], [0], [1], [0, 0, 1, 1], [], []>} : vector<1x4xf32>, vector<4x4xf32>, vector<1x4xf32> -> vector<1x4xf32>
    %8 = arith.addf %6, %7 : vector<1x4xf32>
    %9 = math.tanh %8 : vector<1x4xf32>
    %c0_7 = arith.constant 0 : index
    %c0_8 = arith.constant 0 : index
    %c0_9 = arith.constant 0 : index
    %10 = vector.load %arg3[%c0_7, %c0_8, %c0_9] : memref<5x1x4xf32, #tpu.memory_space<vmem>>, vector<1x1x4xf32>
    %11 = vector.shape_cast %10 : vector<1x1x4xf32> to vector<1x4xf32>
    %12 = vector.shape_cast %9 : vector<1x4xf32> to vector<1x1x4xf32>
    tpu.vector_store %arg3[%c0_7, %c0_8, %c0_9], %12 {strides = array<i32>} : memref<5x1x4xf32, #tpu.memory_space<vmem>>, vector<1x1x4xf32>,
    %c1 = arith.constant 1 : index
    %c0_10 = arith.constant 0 : index
    %c0_11 = arith.constant 0 : index
    %13 = vector.load %arg1[%c1, %c0_10, %c0_11] : memref<5x1x4xf32, #tpu.memory_space<vmem>>, vector<1x1x4xf32>
    %14 = vector.shape_cast %13 : vector<1x1x4xf32> to vector<1x4xf32>
    %cst_12 = arith.constant dense<0.000000e+00> : vector<1x4xf32>
    %15 = tpu.matmul %9, %3, %cst_12 {dimension_numbers = #tpu.dot_dimension_numbers<[1], [0], [0], [1], [0, 0, 1, 1], [], []>} : vector<1x4xf32>, vector<4x4xf32>, vector<1x4xf32> -> vector<1x4xf32>
    %16 = arith.addf %14, %15 : vector<1x4xf32>
    %17 = math.tanh %16 : vector<1x4xf32>
    %c1_13 = arith.constant 1 : index
    %c0_14 = arith.constant 0 : index
    %c0_15 = arith.constant 0 : index
    %18 = vector.load %arg3[%c1_13, %c0_14, %c0_15] : memref<5x1x4xf32, #tpu.memory_space<vmem>>, vector<1x1x4xf32>
    %19 = vector.shape_cast %18 : vector<1x1x4xf32> to vector<1x4xf32>
    %20 = vector.shape_cast %17 : vector<1x4xf32> to vector<1x1x4xf32>
    tpu.vector_store %arg3[%c1_13, %c0_14, %c0_15], %20 {strides = array<i32>} : memref<5x1x4xf32, #tpu.memory_space<vmem>>, vector<1x1x4xf32>,
    %c2 = arith.constant 2 : index
    %c0_16 = arith.constant 0 : index
    %c0_17 = arith.constant 0 : index
    %21 = vector.load %arg1[%c2, %c0_16, %c0_17] : memref<5x1x4xf32, #tpu.memory_space<vmem>>, vector<1x1x4xf32>
    %22 = vector.shape_cast %21 : vector<1x1x4xf32> to vector<1x4xf32>
    %cst_18 = arith.constant dense<0.000000e+00> : vector<1x4xf32>
    %23 = tpu.matmul %17, %3, %cst_18 {dimension_numbers = #tpu.dot_dimension_numbers<[1], [0], [0], [1], [0, 0, 1, 1], [], []>} : vector<1x4xf32>, vector<4x4xf32>, vector<1x4xf32> -> vector<1x4xf32>
    %24 = arith.addf %22, %23 : vector<1x4xf32>
    %25 = math.tanh %24 : vector<1x4xf32>
    %c2_19 = arith.constant 2 : index
    %c0_20 = arith.constant 0 : index
    %c0_21 = arith.constant 0 : index
    %26 = vector.load %arg3[%c2_19, %c0_20, %c0_21] : memref<5x1x4xf32, #tpu.memory_space<vmem>>, vector<1x1x4xf32>
    %27 = vector.shape_cast %26 : vector<1x1x4xf32> to vector<1x4xf32>
    %28 = vector.shape_cast %25 : vector<1x4xf32> to vector<1x1x4xf32>
    tpu.vector_store %arg3[%c2_19, %c0_20, %c0_21], %28 {strides = array<i32>} : memref<5x1x4xf32, #tpu.memory_space<vmem>>, vector<1x1x4xf32>,
    %c3 = arith.constant 3 : index
    %c0_22 = arith.constant 0 : index
    %c0_23 = arith.constant 0 : index
    %29 = vector.load %arg1[%c3, %c0_22, %c0_23] : memref<5x1x4xf32, #tpu.memory_space<vmem>>, vector<1x1x4xf32>
    %30 = vector.shape_cast %29 : vector<1x1x4xf32> to vector<1x4xf32>
    %cst_24 = arith.constant dense<0.000000e+00> : vector<1x4xf32>
    %31 = tpu.matmul %25, %3, %cst_24 {dimension_numbers = #tpu.dot_dimension_numbers<[1], [0], [0], [1], [0, 0, 1, 1], [], []>} : vector<1x4xf32>, vector<4x4xf32>, vector<1x4xf32> -> vector<1x4xf32>
    %32 = arith.addf %30, %31 : vector<1x4xf32>
    %33 = math.tanh %32 : vector<1x4xf32>
    %c3_25 = arith.constant 3 : index
    %c0_26 = arith.constant 0 : index
    %c0_27 = arith.constant 0 : index
    %34 = vector.load %arg3[%c3_25, %c0_26, %c0_27] : memref<5x1x4xf32, #tpu.memory_space<vmem>>, vector<1x1x4xf32>
    %35 = vector.shape_cast %34 : vector<1x1x4xf32> to vector<1x4xf32>
    %36 = vector.shape_cast %33 : vector<1x4xf32> to vector<1x1x4xf32>
    tpu.vector_store %arg3[%c3_25, %c0_26, %c0_27], %36 {strides = array<i32>} : memref<5x1x4xf32, #tpu.memory_space<vmem>>, vector<1x1x4xf32>,
    %c4 = arith.constant 4 : index
    %c0_28 = arith.constant 0 : index
    %c0_29 = arith.constant 0 : index
    %37 = vector.load %arg1[%c4, %c0_28, %c0_29] : memref<5x1x4xf32, #tpu.memory_space<vmem>>, vector<1x1x4xf32>
    %38 = vector.shape_cast %37 : vector<1x1x4xf32> to vector<1x4xf32>
    %cst_30 = arith.constant dense<0.000000e+00> : vector<1x4xf32>
    %39 = tpu.matmul %33, %3, %cst_30 {dimension_numbers = #tpu.dot_dimension_numbers<[1], [0], [0], [1], [0, 0, 1, 1], [], []>} : vector<1x4xf32>, vector<4x4xf32>, vector<1x4xf32> -> vector<1x4xf32>
    %40 = arith.addf %38, %39 : vector<1x4xf32>
    %41 = math.tanh %40 : vector<1x4xf32>
    %c4_31 = arith.constant 4 : index
    %c0_32 = arith.constant 0 : index
    %c0_33 = arith.constant 0 : index
    %42 = vector.load %arg3[%c4_31, %c0_32, %c0_33] : memref<5x1x4xf32, #tpu.memory_space<vmem>>, vector<1x1x4xf32>
    %43 = vector.shape_cast %42 : vector<1x1x4xf32> to vector<1x4xf32>
    %44 = vector.shape_cast %41 : vector<1x4xf32> to vector<1x1x4xf32>
    tpu.vector_store %arg3[%c4_31, %c0_32, %c0_33], %44 {strides = array<i32>} : memref<5x1x4xf32, #tpu.memory_space<vmem>>, vector<1x1x4xf32>,
    %c0_34 = arith.constant 0 : index
    %c0_35 = arith.constant 0 : index
    %45 = vector.load %arg4[%c0_34, %c0_35] : memref<1x4xf32, #tpu.memory_space<vmem>>, vector<1x4xf32>
    tpu.vector_store %arg4[%c0_34, %c0_35], %41 {strides = array<i32>} : memref<1x4xf32, #tpu.memory_space<vmem>>, vector<1x4xf32>,
    return
  }
  func.func @transform_0(%arg0: i32) -> (i32, i32, i32) {
    %c0_i32 = arith.constant 0 : i32
    %c0_i32_0 = arith.constant 0 : i32
    %c0_i32_1 = arith.constant 0 : i32
    return %arg0, %c0_i32, %c0_i32_0 : i32, i32, i32
  }
  func.func @transform_1(%arg0: i32) -> (i32, i32) {
    %c0_i32 = arith.constant 0 : i32
    %c0_i32_0 = arith.constant 0 : i32
    %c0_i32_1 = arith.constant 0 : i32
    return %c0_i32, %c0_i32_0 : i32, i32
  }
  func.func @transform_2(%arg0: i32) -> (i32, i32, i32) {
    %c0_i32 = arith.constant 0 : i32
    %c0_i32_0 = arith.constant 0 : i32
    %c0_i32_1 = arith.constant 0 : i32
    return %arg0, %c0_i32, %c0_i32_0 : i32, i32, i32
  }
}

</mosaic_0001>

<llo_original>
// kernel: tpu_custom_call.1
$region0: #{tpu_custom_call.1}
  #allocation0 [shape = 'u32[]', space=smem, size = 0x4, offset = 0x4, fixed_abs, tag = 'smem constant byte address 0x4 - core index']
  #allocation1 [shape = 'u32[72,128]{1,0:T(1,128)}', space=vmem, size = 0x9000, scoped, tag = 'internal scratch']
  #allocation2 [shape = 'f32[1,4]{1,0:T(1,128)}', space=vmem, size = 0x200, scoped, tag = 'scratch operand']
  %s0 = inlined_call_operand.vmem [shape: f32[5,1,4], index: 0, kind: input, shape index: {}]
  %s1 = inlined_call_operand.vmem [shape: f32[4,4], index: 1, kind: input, shape index: {}]
  %s2 = inlined_call_operand.vmem [shape: f32[5,1,4], index: 2, kind: output, shape index: {}]
  %s3 = sld [smem:[#allocation0]]
  $region22: #{tpu_custom_call.1} parent=0
    _
  %s5 = ssub.s32 1, %s3
  %s6 = scalar_select 0, %s5, %s3
  // Predicated region
  $region2: #{tpu_custom_call.1} parent=0 // pred_check
    _
  $region3: #{tpu_custom_call.1} parent=0 // pred_check_branch
    %8 = sbr.rel (0) target = $region5
  $region4: #{tpu_custom_call.1} parent=0 // pred_region
    _
  $region5: #{tpu_custom_call.1} parent=0 // pred_fallthru
    _
  // Predicated region
  $region6: #{tpu_custom_call.1} parent=0 // pred_check
    _
  $region7: #{tpu_custom_call.1} parent=0 // pred_check_branch
    %10 = sbr.rel (0) target = $region9
  $region8: #{tpu_custom_call.1} parent=0 // pred_region
    _
  $region9: #{tpu_custom_call.1} parent=0 // pred_fallthru
    _
  %p11 = scmp.eq.s32.totalorder 0, 0
  // Predicated region
  $region10: #{tpu_custom_call.1} parent=0 // pred_check
    %p12 = pneg %p11
  $region11: #{tpu_custom_call.1} parent=0 // pred_check_branch
    %14 = sbr.rel (%p12) target = $region13
  $region12: #{tpu_custom_call.1} parent=0 // pred_region
    %vm15 = vcmask 24576
    %16 = vst.msk [vmem:[#allocation2] sm:$0x1] %vm15, 0.0
  $region13: #{tpu_custom_call.1} parent=0 // pred_fallthru
    _
  %v17 = vld [vmem:[%s1] sm:$0xf]
  %v18 = vld [vmem:[#allocation2] sm:$0x1]
  %v19 = vld [vmem:[%s0] sm:$0x1]
  %vm20 = vcmask 31744
  %v22 = vsel %vm20, %v18, 0
  %vm24 = vcmask 1043456
  %v26 = vsel %vm24, %v17, 0
  %28 = vmatpush.msra.mxu0 0.0
  %29 = vmatpush.msra.mxu0 0.0
  %30 = vmatpush.msra.mxu0 0.0
  %31 = vmatpush.msra.mxu0 0.0
  %32 = vmatpush.msra.mxu0 0.0
  %33 = vmatpush.msra.mxu0 0.0
  %34 = vmatpush.msra.mxu0 0.0
  %35 = vmatpush.msra.mxu0 0.0
  %36 = vmatpush.msra.mxu0 0.0
  %37 = vmatpush.msra.mxu0 0.0
  %38 = vmatpush.msra.mxu0 0.0
  %39 = vmatpush.msra.mxu0 0.0
  %40 = vmatpush.msra.mxu0 0.0
  %41 = vmatpush.msra.mxu0 0.0
  %42 = vmatpush.msra.mxu0 0.0
  %43 = vmatpush.msra.mxu0 %v26
  %44 = vmatmul.f32.gmra.mxu0 %v22
  %v45 = vpop.f32.mrf.mxu0
  %v46 = vadd.f32 0.0, %v45
  %47 = vdwg.mxu0
  %v48 = vadd.f32 %v19, %v46
  %v49 = vtanh.pop %v48
  %vm50 = vcmask 24576
  %51 = vst.msk [vmem:[%s2] sm:$0x1] %vm50, %v49
  %s52 = scalar_lea.vmem %s0, 1
  %v53 = vld [vmem:[%s52] sm:$0x1]
  %v55 = vsel %vm20, %v49, 0
  %57 = vmatpush.msra.mxu0 0.0
  %58 = vmatpush.msra.mxu0 0.0
  %59 = vmatpush.msra.mxu0 0.0
  %60 = vmatpush.msra.mxu0 0.0
  %61 = vmatpush.msra.mxu0 0.0
  %62 = vmatpush.msra.mxu0 0.0
  %63 = vmatpush.msra.mxu0 0.0
  %64 = vmatpush.msra.mxu0 0.0
  %65 = vmatpush.msra.mxu0 0.0
  %66 = vmatpush.msra.mxu0 0.0
  %67 = vmatpush.msra.mxu0 0.0
  %68 = vmatpush.msra.mxu0 0.0
  %69 = vmatpush.msra.mxu0 0.0
  %70 = vmatpush.msra.mxu0 0.0
  %71 = vmatpush.msra.mxu0 0.0
  %72 = vmatpush.msra.mxu0 %v26
  %73 = vmatmul.f32.gmra.mxu0 %v55
  %v74 = vpop.f32.mrf.mxu0
  %v75 = vadd.f32 0.0, %v74
  %76 = vdwg.mxu0
  %v77 = vadd.f32 %v53, %v75
  %v78 = vtanh.pop %v77
  %s79 = scalar_lea.vmem %s2, 1
  %80 = vst.msk [vmem:[%s79] sm:$0x1] %vm50, %v78
  %s81 = scalar_lea.vmem %s0, 2
  %v82 = vld [vmem:[%s81] sm:$0x1]
  %v84 = vsel %vm20, %v78, 0
  %86 = vmatpush.msra.mxu0 0.0
  %87 = vmatpush.msra.mxu0 0.0
  %88 = vmatpush.msra.mxu0 0.0
  %89 = vmatpush.msra.mxu0 0.0
  %90 = vmatpush.msra.mxu0 0.0
  %91 = vmatpush.msra.mxu0 0.0
  %92 = vmatpush.msra.mxu0 0.0
  %93 = vmatpush.msra.mxu0 0.0
  %94 = vmatpush.msra.mxu0 0.0
  %95 = vmatpush.msra.mxu0 0.0
  %96 = vmatpush.msra.mxu0 0.0
  %97 = vmatpush.msra.mxu0 0.0
  %98 = vmatpush.msra.mxu0 0.0
  %99 = vmatpush.msra.mxu0 0.0
  %100 = vmatpush.msra.mxu0 0.0
  %101 = vmatpush.msra.mxu0 %v26
  %102 = vmatmul.f32.gmra.mxu0 %v84
  %v103 = vpop.f32.mrf.mxu0
  %v104 = vadd.f32 0.0, %v103
  %105 = vdwg.mxu0
  %v106 = vadd.f32 %v82, %v104
  %v107 = vtanh.pop %v106
  %s108 = scalar_lea.vmem %s2, 2
  %109 = vst.msk [vmem:[%s108] sm:$0x1] %vm50, %v107
  %s110 = scalar_lea.vmem %s0, 3
  %v111 = vld [vmem:[%s110] sm:$0x1]
  %v113 = vsel %vm20, %v107, 0
  %115 = vmatpush.msra.mxu0 0.0
  %116 = vmatpush.msra.mxu0 0.0
  %117 = vmatpush.msra.mxu0 0.0
  %118 = vmatpush.msra.mxu0 0.0
  %119 = vmatpush.msra.mxu0 0.0
  %120 = vmatpush.msra.mxu0 0.0
  %121 = vmatpush.msra.mxu0 0.0
  %122 = vmatpush.msra.mxu0 0.0
  %123 = vmatpush.msra.mxu0 0.0
  %124 = vmatpush.msra.mxu0 0.0
  %125 = vmatpush.msra.mxu0 0.0
  %126 = vmatpush.msra.mxu0 0.0
  %127 = vmatpush.msra.mxu0 0.0
  %128 = vmatpush.msra.mxu0 0.0
  %129 = vmatpush.msra.mxu0 0.0
  %130 = vmatpush.msra.mxu0 %v26
  %131 = vmatmul.f32.gmra.mxu0 %v113
  %v132 = vpop.f32.mrf.mxu0
  %v133 = vadd.f32 0.0, %v132
  %134 = vdwg.mxu0
  %v135 = vadd.f32 %v111, %v133
  %v136 = vtanh.pop %v135
  %s137 = scalar_lea.vmem %s2, 3
  %138 = vst.msk [vmem:[%s137] sm:$0x1] %vm50, %v136
  %s139 = scalar_lea.vmem %s0, 4
  %v140 = vld [vmem:[%s139] sm:$0x1]
  %v142 = vsel %vm20, %v136, 0
  %144 = vmatpush.msra.mxu0 0.0
  %145 = vmatpush.msra.mxu0 0.0
  %146 = vmatpush.msra.mxu0 0.0
  %147 = vmatpush.msra.mxu0 0.0
  %148 = vmatpush.msra.mxu0 0.0
  %149 = vmatpush.msra.mxu0 0.0
  %150 = vmatpush.msra.mxu0 0.0
  %151 = vmatpush.msra.mxu0 0.0
  %152 = vmatpush.msra.mxu0 0.0
  %153 = vmatpush.msra.mxu0 0.0
  %154 = vmatpush.msra.mxu0 0.0
  %155 = vmatpush.msra.mxu0 0.0
  %156 = vmatpush.msra.mxu0 0.0
  %157 = vmatpush.msra.mxu0 0.0
  %158 = vmatpush.msra.mxu0 0.0
  %159 = vmatpush.msra.mxu0 %v26
  %160 = vmatmul.f32.gmra.mxu0 %v142
  %v161 = vpop.f32.mrf.mxu0
  %v162 = vadd.f32 0.0, %v161
  %163 = vdwg.mxu0
  %v164 = vadd.f32 %v140, %v162
  %v165 = vtanh.pop %v164
  %s166 = scalar_lea.vmem %s2, 4
  %167 = vst.msk [vmem:[%s166] sm:$0x1] %vm50, %v165
  %168 = vst.msk [vmem:[#allocation2] sm:$0x1] %vm50, %v165
  // Predicated region
  $region14: #{tpu_custom_call.1} parent=0 // pred_check
    _
  $region15: #{tpu_custom_call.1} parent=0 // pred_check_branch
    %170 = sbr.rel (0) target = $region17
  $region16: #{tpu_custom_call.1} parent=0 // pred_region
    _
  $region17: #{tpu_custom_call.1} parent=0 // pred_fallthru
    _
  // Predicated region
  $region18: #{tpu_custom_call.1} parent=0 // pred_check
    _
  $region19: #{tpu_custom_call.1} parent=0 // pred_check_branch
    %172 = sbr.rel (0) target = $region21
  $region20: #{tpu_custom_call.1} parent=0 // pred_region
    _
  $region21: #{tpu_custom_call.1} parent=0 // pred_fallthru
    _

</llo_original>
